<compile_context>
chip_gen: v5e
topology: v5e:2x2
jax: 0.10.0
libtpu: 0.0.40
codegen_flags: <defaults>
</compile_context>

<pallas_src>
import math

import jax
import jax.numpy as jnp
from jax.experimental import pallas as pl
from jax.experimental.pallas import tpu as pltpu


def _sinusoidal_kernel(freq_ref, out_ref):
    # freq_ref: (1, D) f32 — pair-shared frequencies: freq[2i] == freq[2i+1] == f_i
    # out_ref : (1, TL, D) f32 block covering sequence rows [i*TL, i*TL + TL)
    tl = out_ref.shape[1]
    d = out_ref.shape[2]

    row0 = pl.program_id(0) * tl                                   # scalar block-row offset
    # (TL, 1) position column (sublane iota); broadcasts against the (1, D) freq row.
    pos = (jax.lax.broadcasted_iota(jnp.int32, (tl, 1), 0) + row0).astype(jnp.float32)
    angle = pos * freq_ref[...]                                    # (TL,1) * (1,D) -> (TL,D)

    # Grid-invariant (1, D) parity row; jnp.where broadcasts it over the tile.
    is_even = (jax.lax.broadcasted_iota(jnp.int32, (1, d), 1) & 1) == 0
    out_ref[0] = jnp.where(is_even, jnp.sin(angle), jnp.cos(angle))


def _round_up(x: int, m: int) -> int:
    return ((x + m - 1) // m) * m


def _pick_tile_rows(seq_len: int, dim: int, tile_rows: int) -> int:
    # Double-buffered output block is 2 * TL * dim * 4 B. Keep it <= ~12 MiB so it fits
    # v5e's 16 MiB default scoped VMEM and stays comfortable on v7x (64 MiB physical),
    # without having to raise vmem_limit_bytes anywhere.
    budget_bytes = 12 * 1024 * 1024
    max_tl_vmem = max(8, (budget_bytes // (2 * 4 * dim)) // 8 * 8)
    tl = max(8, min(tile_rows, max_tl_vmem))
    if seq_len < 16:
        return seq_len                      # single tiny tile; full-extent block dims
    if seq_len <= 2 * tl:
        # Guarantee >= 2 tiles so v7x's two TensorCores both get work.
        tl = _round_up(pl.cdiv(seq_len, 2), 8)
    return tl


def _build_pe_table(seq_len: int, dim: int, tile_rows: int = 512) -> jax.Array:
    """One pallas_call producing the (1, seq_len, dim) float32 sinusoidal table."""
    assert dim % 2 == 0, "dim must be even (as in the PyTorch module)"
    assert tile_rows % 8 == 0

    # Column-only work hoisted out of the kernel: (1, dim) pair-shared frequency row.
    half = jnp.exp(jnp.arange(0, dim, 2, dtype=jnp.float32)
                   * (-(math.log(10000.0) / dim)))                 # (dim/2,)
    freq_row = jnp.repeat(half, 2)[None, :]                        # (1, dim)

    tl = _pick_tile_rows(seq_len, dim, tile_rows)
    grid = (pl.cdiv(seq_len, tl),)

    return pl.pallas_call(
        _sinusoidal_kernel,
        out_shape=jax.ShapeDtypeStruct((1, seq_len, dim), jnp.float32),
        grid=grid,
        in_specs=[pl.BlockSpec((1, dim), lambda i: (0, 0))],
        out_specs=pl.BlockSpec((1, tl, dim), lambda i: (0, i, 0)),
        compiler_params=pltpu.CompilerParams(
            dimension_semantics=("parallel",)),
    )(freq_row)


def make_sinusoidal_embedding(dim: int, max_seq_len: int = 5000, tile_rows: int = 512):
    """Preferred path — mirrors PyTorch register_buffer: build pe once, slice per call."""
    pe = _build_pe_table(max_seq_len, dim, tile_rows)              # (1, max_seq_len, dim)

    def forward(x: jax.Array) -> jax.Array:
        seq_len = x.shape[0]
        assert 0 < seq_len <= max_seq_len, "sequence length exceeds max_seq_len"
        return pe[:, :seq_len]                                     # free slice, no kernel

    return forward


def sinusoidal_embedding(x: jax.Array, dim: int, max_seq_len: int = 5000,
                         tile_rows: int = 512) -> jax.Array:
    """Per-call fallback equivalent of SinusoidalEmbedding(dim, max_seq_len).forward(x).

    Only x.shape[0] (sequence length) is consulted, matching the PyTorch forward.
    Each distinct seq_len recompiles; prefer make_sinusoidal_embedding() for serving.
    """
    seq_len = x.shape[0]
    assert 0 < seq_len <= max_seq_len, "sequence length exceeds max_seq_len"
    return _build_pe_table(seq_len, dim, tile_rows)


def _reference(seq_len: int, dim: int) -> jnp.ndarray:
    # Pure-JAX reference mirroring the PyTorch buffer construction.
    position = jnp.arange(seq_len, dtype=jnp.float32)[:, None]
    freq = jnp.exp(jnp.arange(0, dim, 2, dtype=jnp.float32) * -(math.log(10000.0) / dim))
    pe = jnp.zeros((seq_len, dim), dtype=jnp.float32)
    pe = pe.at[:, 0::2].set(jnp.sin(position * freq))
    pe = pe.at[:, 1::2].set(jnp.cos(position * freq))
    return pe[None]


if __name__ == "__main__":
    key = jax.random.PRNGKey(0)

    # Small case, matching the module's expected input layout (seq, batch, hidden).
    seq_len, batch, dim = 8, 2, 32
    x = jax.random.normal(key, (seq_len, batch, dim), dtype=jnp.float32)

    out = jax.block_until_ready(sinusoidal_embedding(x, dim=dim, max_seq_len=5000))
    ref = _reference(seq_len, dim)
    assert out.shape == (1, seq_len, dim)
    assert out.dtype == jnp.float32
    assert jnp.allclose(out, ref, atol=1e-5, rtol=1e-5)

    # Preferred register_buffer-style path: build table once, slice per forward.
    fwd = make_sinusoidal_embedding(dim=dim, max_seq_len=64)
    out_b = jax.block_until_ready(fwd(x))
    assert out_b.shape == (1, seq_len, dim)
    assert jnp.allclose(out_b, ref, atol=1e-5, rtol=1e-5)

    # Larger case: exercises grid > 1, per-block row offset, and the (1,D) parity broadcast.
    seq2, dim2 = 1024, 128
    x2 = jax.random.normal(key, (seq2, batch, dim2), dtype=jnp.float32)
    out2 = jax.block_until_ready(sinusoidal_embedding(x2, dim=dim2))
    ref2 = _reference(seq2, dim2)
    assert out2.shape == (1, seq2, dim2)
    # Slightly looser tolerance: large-angle sin/cos may use different (but individually
    # accurate) expansions in XLA vs. Mosaic.
    assert jnp.allclose(out2, ref2, atol=1e-4, rtol=1e-4)

    print("KERNEL_OK")
</pallas_src>

<mosaic_0001>
module attributes {stable_mosaic.version = 11 : i64} {
  func.func @_sinusoidal_kernel(%arg0: i32, %arg1: memref<1x32xf32, #tpu.memory_space<vmem>>, %arg2: memref<1x8x32xf32, #tpu.memory_space<vmem>>) attributes {dimension_semantics = [#tpu.dimension_semantics<parallel>], iteration_bounds = array<i64: 1>, scalar_prefetch = 0 : i64, scratch_operands = 0 : i64, tpu.core_type = #tpu.core_type<tc>, window_params = [{pipeline_mode = #tpu.pipeline_mode<synchronous>, transform_indices = @transform_0, window_bounds = array<i64: 1, 32>}, {transform_indices = @transform_1, window_bounds = array<i64: 1, 8, 32>}]} {
    %c8_i32 = arith.constant 8 : i32
    %0 = arith.muli %arg0, %c8_i32 : i32
    %1 = tpu.iota {dimensions = array<i32: 0>} : vector<8x1xi32>
    %2 = vector.broadcast %0 : i32 to vector<8x1xi32>
    %3 = arith.addi %1, %2 : vector<8x1xi32>
    %4 = arith.sitofp %3 : vector<8x1xi32> to vector<8x1xf32>
    %c0 = arith.constant 0 : index
    %c0_0 = arith.constant 0 : index
    %5 = vector.load %arg1[%c0, %c0_0] : memref<1x32xf32, #tpu.memory_space<vmem>>, vector<1x32xf32>
    %6 = vector.broadcast %4 : vector<8x1xf32> to vector<8x32xf32>
    %7 = vector.broadcast %5 : vector<1x32xf32> to vector<8x32xf32>
    %8 = arith.mulf %6, %7 : vector<8x32xf32>
    %9 = tpu.iota {dimensions = array<i32: 1>} : vector<1x32xi32>
    %c1_i32 = arith.constant 1 : i32
    %10 = vector.broadcast %c1_i32 : i32 to vector<1x32xi32>
    %11 = arith.andi %9, %10 : vector<1x32xi32>
    %c0_i32 = arith.constant 0 : i32
    %12 = vector.broadcast %c0_i32 : i32 to vector<1x32xi32>
    %13 = arith.cmpi eq, %11, %12 : vector<1x32xi32>
    %14 = math.sin %8 : vector<8x32xf32>
    %15 = math.cos %8 : vector<8x32xf32>
    %16 = vector.shape_cast %13 : vector<1x32xi1> to vector<1x32xi1>
    %17 = vector.broadcast %16 : vector<1x32xi1> to vector<8x32xi1>
    %18 = arith.select %17, %14, %15 : vector<8x32xi1>, vector<8x32xf32>
    %c0_1 = arith.constant 0 : index
    %c0_2 = arith.constant 0 : index
    %c0_3 = arith.constant 0 : index
    %19 = vector.load %arg2[%c0_1, %c0_2, %c0_3] : memref<1x8x32xf32, #tpu.memory_space<vmem>>, vector<1x8x32xf32>
    %20 = vector.shape_cast %19 : vector<1x8x32xf32> to vector<8x32xf32>
    %21 = vector.shape_cast %18 : vector<8x32xf32> to vector<1x8x32xf32>
    tpu.vector_store %arg2[%c0_1, %c0_2, %c0_3], %21 {strides = array<i32>} : memref<1x8x32xf32, #tpu.memory_space<vmem>>, vector<1x8x32xf32>,
    return
  }
  func.func @transform_0(%arg0: i32) -> (i32, i32) {
    %c0_i32 = arith.constant 0 : i32
    %c0_i32_0 = arith.constant 0 : i32
    %c0_i32_1 = arith.constant 0 : i32
    return %c0_i32, %c0_i32_0 : i32, i32
  }
  func.func @transform_1(%arg0: i32) -> (i32, i32, i32) {
    %c0_i32 = arith.constant 0 : i32
    %c0_i32_0 = arith.constant 0 : i32
    %c0_i32_1 = arith.constant 0 : i32
    return %c0_i32, %arg0, %c0_i32_0 : i32, i32, i32
  }
}

</mosaic_0001>

<llo_original>
// kernel: tpu_custom_call.1
$region0: #{tpu_custom_call.1}
  #allocation0 [shape = 'u32[]', space=smem, size = 0x4, offset = 0x4, fixed_abs, tag = 'smem constant byte address 0x4 - core index']
  #allocation1 [shape = 'u32[72,128]{1,0:T(1,128)}', space=vmem, size = 0x9000, scoped, tag = 'internal scratch']
  %s0 = inlined_call_operand.hbm [shape: f32[1,32], index: 0, kind: input, shape index: {}]
  %s1 = inlined_call_operand.hbm [shape: f32[1,8,32], index: 1, kind: output, shape index: {}]
  %s2 = sld [smem:[#allocation0]]
  $region18: #{tpu_custom_call.1} parent=0
    _
  %s4 = ssub.s32 1, %s2
  %s5 = scalar_select 0, %s4, %s2
  $region1: #{tpu_custom_call.1} parent=0
    #allocation2 [shape = 'u8[512]{0}', space=vmem, size = 0x400, scoped, tag = 'input window, operand 0, single buffered']
    #allocation3 [shape = 's32[1]{0}', space=sflag, size = 0x4, scoped, tag = 'scoped memory for tpu_custom_call.1']
    #allocation4 [shape = 's32[1]{0}', space=sflag, size = 0x4, scoped, tag = 'scoped memory for tpu_custom_call.1']
    #allocation5 [shape = 'u8[4096]{0}', space=vmem, size = 0x1000, scoped, tag = 'output window, operand 0, single buffered']
    %6 = vsyncpa [#allocation3], 0
    %7 = vsyncpa [#allocation4], 0
    // Predicated region
    $region2: #{tpu_custom_call.1} parent=1 // pred_check
      _
    $region3: #{tpu_custom_call.1} parent=1 // pred_check_branch
      %9 = sbr.rel (0) target = $region5
    $region4: #{tpu_custom_call.1} parent=1 // pred_region
      %11 = vsyncadd [#allocation3], 0
      %s13 = sshll.u32 %s0, 4
      %s14 = int_to_ptr.hbm [resolvable:$true] %s13
      %s15 = sshll.u32 [#allocation2], 4
      %s16 = int_to_ptr.vmem [resolvable:$true] %s15
      %18 = dma.hbm_to_vmem [thread:$0]  %s14, 16, %s16, [#allocation3]
    $region5: #{tpu_custom_call.1} parent=1 // pred_fallthru
      _
    // Predicated region
    $region6: #{tpu_custom_call.1} parent=1 // pred_check
      _
    $region7: #{tpu_custom_call.1} parent=1 // pred_check_branch
      %20 = sbr.rel (0) target = $region9
    $region8: #{tpu_custom_call.1} parent=1 // pred_region
      %22 = dma.done [#allocation3], 16
    $region9: #{tpu_custom_call.1} parent=1 // pred_fallthru
      _
    %s23 = smul.u32 0, 8
    %v24 = vlaneseq
    %v25 = vshrl.u32 %v24, 7
    %v26 = vstv %s23
    %v27 = vadd.s32 %v25, %v26
    %v28 = vcvt.s32.f32 %v27
    %v29 = vld [vmem:[#allocation2] sm:$0x1]
    %v31 = vperm.slane %v29, 0
    %v33 = vmul.f32 %v28, %v31
    %v34 = vlaneseq
    %v35 = vand.u32 %v34, 127
    %v36 = vand.u32 %v35, 1
    %vm37 = vcmp.eq.s32.totalorder %v36, 0
    %v38 = vand.u32 2147483647, %v33
    %vm39 = vcmp.le.f32.partialorder %v38, 0.7853982
    %vm40 = vcmp.lt.s32.totalorder %v33, 0
    %v41 = vand.u32 %v33, 2139095040
    %v42 = vshrl.u32 %v41, 23
    %v43 = vsub.s32 %v42, 127
    %v44 = vand.u32 2147483647, %v33
    %v45 = vand.u32 %v44, 8388607
    %v46 = vor.u32 %v45, 8388608
    %v47 = vsub.s32 0, %v46
    %v48 = vadd.s32 %v43, 1
    %vm49 = vcmp.gt.s32.totalorder %v48, 0
    %v50 = vsel %vm49, %v48, 0
    %v51 = vshrl.u32 %v50, 5
    %v52 = vand.u32 %v50, 31
    %v53 = vsub.s32 32, %v52
    %v54 = vshrl.u32 683565275, %v53
    %v55 = vshll.u32 683565275, %v52
    %v56 = vshrl.u32 2475754826, %v53
    %v57 = vor.u32 %v55, %v56
    %v58 = vshll.u32 2475754826, %v52
    %v59 = vshrl.u32 2131351028, %v53
    %v60 = vor.u32 %v58, %v59
    %v61 = vshll.u32 2131351028, %v52
    %v62 = vshrl.u32 2102212464, %v53
    %v63 = vor.u32 %v61, %v62
    %v64 = vshll.u32 2102212464, %v52
    %v65 = vshrl.u32 920167782, %v53
    %v66 = vor.u32 %v64, %v65
    %v67 = vshll.u32 920167782, %v52
    %v68 = vshrl.u32 1326507024, %v53
    %v69 = vor.u32 %v67, %v68
    %vm70 = vcmp.lt.s32.totalorder %v51, 1
    %vm71 = vcmp.lt.s32.totalorder %v51, 2
    %vm72 = vcmp.lt.s32.totalorder %v51, 3
    %vm73 = vcmp.lt.s32.totalorder %v51, 4
    %v74 = vsel %vm70, %v54, %v57
    %v75 = vsel %vm73, %v63, 2102212464
    %v76 = vsel %vm72, %v60, %v75
    %v77 = vsel %vm71, %v74, %v76
    %v78 = vsel %vm70, %v57, %v60
    %v79 = vsel %vm73, %v66, 920167782
    %v80 = vsel %vm72, %v63, %v79
    %v81 = vsel %vm71, %v78, %v80
    %v82 = vsel %vm70, %v60, %v63
    %v83 = vsel %vm73, %v69, 1326507024
    %v84 = vsel %vm72, %v66, %v83
    %v85 = vsel %vm71, %v82, %v84
    %v86 = vshll.u32 %v46, 8
    %v87 = vand.u32 %v86, 65535
    %v88 = vshrl.u32 %v86, 16
    %v89 = vand.u32 %v85, 65535
    %v90 = vshrl.u32 %v85, 16
    %v91 = vmul.u32 %v87, %v89
    %v92 = vmul.u32 %v87, %v90
    %v93 = vmul.u32 %v88, %v89
    %v94 = vmul.u32 %v88, %v90
    %v95 = vshll.u32 %v92, 16
    %v96 = vshrl.u32 %v92, 16
    %v97 = vshll.u32 %v93, 16
    %v98 = vshrl.u32 %v93, 16
    %vm99 = vc.u32 %v91, %v95
    %v100 = vsel %vm99, 1, 0
    %v101 = vadd.s32 %v91, %v95
    %v102 = vadd.s32 %v94, %v100
    %vm103 = vc.u32 %v101, %v97
    %v104 = vsel %vm103, 1, 0
    %v105 = vadd.s32 %v101, %v97
    %v106 = vadd.s32 %v102, %v104
    %v107 = vadd.s32 %v106, %v96
    %v108 = vadd.s32 %v107, %v98
    %v109 = vand.u32 %v86, 65535
    %v110 = vshrl.u32 %v86, 16
    %v111 = vand.u32 %v81, 65535
    %v112 = vshrl.u32 %v81, 16
    %v113 = vmul.u32 %v109, %v111
    %v114 = vmul.u32 %v109, %v112
    %v115 = vmul.u32 %v110, %v111
    %v116 = vmul.u32 %v110, %v112
    %v117 = vshll.u32 %v114, 16
    %v118 = vshrl.u32 %v114, 16
    %v119 = vshll.u32 %v115, 16
    %v120 = vshrl.u32 %v115, 16
    %vm121 = vc.u32 %v113, %v117
    %v122 = vsel %vm121, 1, 0
    %v123 = vadd.s32 %v113, %v117
    %v124 = vadd.s32 %v116, %v122
    %vm125 = vc.u32 %v123, %v119
    %v126 = vsel %vm125, 1, 0
    %v127 = vadd.s32 %v123, %v119
    %v128 = vadd.s32 %v124, %v126
    %v129 = vadd.s32 %v128, %v118
    %v130 = vadd.s32 %v129, %v120
    %v131 = vmul.u32 %v86, %v77
    %v132 = vadd.s32 %v108, %v127
    %vm133 = vc.u32 %v108, %v127
    %v134 = vadd.s32 %v130, 1
    %v135 = vsel %vm133, %v134, %v130
    %v136 = vadd.s32 %v131, %v135
    %v137 = vadd.s32 %v136, 536870912
    %v138 = vshrl.u32 %v137, 30
    %v139 = vshll.u32 %v138, 30
    %v140 = vsub.s32 %v136, %v139
    %vm141 = vcmp.lt.s32.totalorder %v140, 0
    %v142 = vsub.s32 0, %v140
    %v143 = vsel %vm141, %v142, %v140
    %v144 = vclz %v143
    %v145 = vsub.s32 %v144, 2
    %vm146 = vcmp.gt.s32.totalorder 0, %v145
    %v147 = vsel %vm146, 0, %v145
    %v148 = vsub.s32 32, %v147
    %v149 = vshll.u32 %v140, %v147
    %v150 = vshrl.u32 %v132, %v148
    %v151 = vor.u32 %v149, %v150
    %v152 = vsub.s32 4294967266, %v147
    %v153 = vadd.s32 %v152, 127
    %v154 = vshll.u32 %v153, 23
    %v155 = vor.u32 4788187, %v154
    %v156 = vand.u32 2147483647, %v155
    %v158 = vcvt.s32.f32 %v151
    %v159 = vmul.f32 %v158, %v156
    %v160 = vxor.u32 %v159, 2147483648
    %v161 = vsel %vm40, %v160, %v159
    %v162 = vsub.s32 4, %v138
    %v163 = vsel %vm40, %v162, %v138
    %v164 = vsel %vm39, %v33, %v161
    %v165 = vsel %vm39, 0, %v163
    %v166 = vmul.f32 %v164, %v164
    %v167 = vmul.f32 %v166, -0.001358992
    %v168 = vadd.f32 %v167, 0.041655596
    %v169 = vmul.f32 %v166, %v168
    %v170 = vadd.f32 %v169, -0.4999988
    %v171 = vmul.f32 %v166, %v170
    %v172 = vadd.f32 1.0, %v171
    %v173 = vmul.f32 %v164, %v164
    %v174 = vmul.f32 %v173, -0.00019511016
    %v175 = vadd.f32 %v174, 0.008332121
    %v176 = vmul.f32 %v173, %v175
    %v177 = vadd.f32 %v176, -0.16666654
    %v178 = vmul.f32 %v173, %v177
    %v179 = vadd.f32 %v178, 1.0
    %v180 = vmul.f32 %v179, %v164
    %vm181 = vweird.f32 %v33
    %v182 = vadd.s32 %v165, 3
    %v183 = vand.u32 %v182, 3
    %vm184 = vcmp.lt.s32.totalorder %v183, 2
    %vm185 = vcmp.eq.s32.totalorder %v183, 0
    %v186 = vxor.u32 %v180, 2147483648
    %v187 = vsel %vm185, %v172, %v186
    %vm188 = vcmp.eq.s32.totalorder %v183, 2
    %v189 = vxor.u32 %v172, 2147483648
    %v190 = vsel %vm188, %v189, %v180
    %v191 = vsel %vm184, %v187, %v190
    %v192 = vsel %vm181, nan, %v191
    %v193 = vand.u32 2147483647, %v33
    %vm194 = vcmp.le.f32.partialorder %v193, 0.7853982
    %vm195 = vcmp.lt.s32.totalorder %v33, 0
    %v196 = vand.u32 %v33, 2139095040
    %v197 = vshrl.u32 %v196, 23
    %v198 = vsub.s32 %v197, 127
    %v199 = vand.u32 2147483647, %v33
    %v200 = vand.u32 %v199, 8388607
    %v201 = vor.u32 %v200, 8388608
    %v202 = vsub.s32 0, %v201
    %v203 = vadd.s32 %v198, 1
    %vm204 = vcmp.gt.s32.totalorder %v203, 0
    %v205 = vsel %vm204, %v203, 0
    %v206 = vshrl.u32 %v205, 5
    %v207 = vand.u32 %v205, 31
    %v208 = vsub.s32 32, %v207
    %v209 = vshrl.u32 683565275, %v208
    %v210 = vshll.u32 683565275, %v207
    %v211 = vshrl.u32 2475754826, %v208
    %v212 = vor.u32 %v210, %v211
    %v213 = vshll.u32 2475754826, %v207
    %v214 = vshrl.u32 2131351028, %v208
    %v215 = vor.u32 %v213, %v214
    %v216 = vshll.u32 2131351028, %v207
    %v217 = vshrl.u32 2102212464, %v208
    %v218 = vor.u32 %v216, %v217
    %v219 = vshll.u32 2102212464, %v207
    %v220 = vshrl.u32 920167782, %v208
    %v221 = vor.u32 %v219, %v220
    %v222 = vshll.u32 920167782, %v207
    %v223 = vshrl.u32 1326507024, %v208
    %v224 = vor.u32 %v222, %v223
    %vm225 = vcmp.lt.s32.totalorder %v206, 1
    %vm226 = vcmp.lt.s32.totalorder %v206, 2
    %vm227 = vcmp.lt.s32.totalorder %v206, 3
    %vm228 = vcmp.lt.s32.totalorder %v206, 4
    %v229 = vsel %vm225, %v209, %v212
    %v230 = vsel %vm228, %v218, 2102212464
    %v231 = vsel %vm227, %v215, %v230
    %v232 = vsel %vm226, %v229, %v231
    %v233 = vsel %vm225, %v212, %v215
    %v234 = vsel %vm228, %v221, 920167782
    %v235 = vsel %vm227, %v218, %v234
    %v236 = vsel %vm226, %v233, %v235
    %v237 = vsel %vm225, %v215, %v218
    %v238 = vsel %vm228, %v224, 1326507024
    %v239 = vsel %vm227, %v221, %v238
    %v240 = vsel %vm226, %v237, %v239
    %v241 = vshll.u32 %v201, 8
    %v242 = vand.u32 %v241, 65535
    %v243 = vshrl.u32 %v241, 16
    %v244 = vand.u32 %v240, 65535
    %v245 = vshrl.u32 %v240, 16
    %v246 = vmul.u32 %v242, %v244
    %v247 = vmul.u32 %v242, %v245
    %v248 = vmul.u32 %v243, %v244
    %v249 = vmul.u32 %v243, %v245
    %v250 = vshll.u32 %v247, 16
    %v251 = vshrl.u32 %v247, 16
    %v252 = vshll.u32 %v248, 16
    %v253 = vshrl.u32 %v248, 16
    %vm254 = vc.u32 %v246, %v250
    %v255 = vsel %vm254, 1, 0
    %v256 = vadd.s32 %v246, %v250
    %v257 = vadd.s32 %v249, %v255
    %vm258 = vc.u32 %v256, %v252
    %v259 = vsel %vm258, 1, 0
    %v260 = vadd.s32 %v256, %v252
    %v261 = vadd.s32 %v257, %v259
    %v262 = vadd.s32 %v261, %v251
    %v263 = vadd.s32 %v262, %v253
    %v264 = vand.u32 %v241, 65535
    %v265 = vshrl.u32 %v241, 16
    %v266 = vand.u32 %v236, 65535
    %v267 = vshrl.u32 %v236, 16
    %v268 = vmul.u32 %v264, %v266
    %v269 = vmul.u32 %v264, %v267
    %v270 = vmul.u32 %v265, %v266
    %v271 = vmul.u32 %v265, %v267
    %v272 = vshll.u32 %v269, 16
    %v273 = vshrl.u32 %v269, 16
    %v274 = vshll.u32 %v270, 16
    %v275 = vshrl.u32 %v270, 16
    %vm276 = vc.u32 %v268, %v272
    %v277 = vsel %vm276, 1, 0
    %v278 = vadd.s32 %v268, %v272
    %v279 = vadd.s32 %v271, %v277
    %vm280 = vc.u32 %v278, %v274
    %v281 = vsel %vm280, 1, 0
    %v282 = vadd.s32 %v278, %v274
    %v283 = vadd.s32 %v279, %v281
    %v284 = vadd.s32 %v283, %v273
    %v285 = vadd.s32 %v284, %v275
    %v286 = vmul.u32 %v241, %v232
    %v287 = vadd.s32 %v263, %v282
    %vm288 = vc.u32 %v263, %v282
    %v289 = vadd.s32 %v285, 1
    %v290 = vsel %vm288, %v289, %v285
    %v291 = vadd.s32 %v286, %v290
    %v292 = vadd.s32 %v291, 536870912
    %v293 = vshrl.u32 %v292, 30
    %v294 = vshll.u32 %v293, 30
    %v295 = vsub.s32 %v291, %v294
    %vm296 = vcmp.lt.s32.totalorder %v295, 0
    %v297 = vsub.s32 0, %v295
    %v298 = vsel %vm296, %v297, %v295
    %v299 = vclz %v298
    %v300 = vsub.s32 %v299, 2
    %vm301 = vcmp.gt.s32.totalorder 0, %v300
    %v302 = vsel %vm301, 0, %v300
    %v303 = vsub.s32 32, %v302
    %v304 = vshll.u32 %v295, %v302
    %v305 = vshrl.u32 %v287, %v303
    %v306 = vor.u32 %v304, %v305
    %v307 = vsub.s32 4294967266, %v302
    %v308 = vadd.s32 %v307, 127
    %v309 = vshll.u32 %v308, 23
    %v310 = vor.u32 4788187, %v309
    %v311 = vand.u32 2147483647, %v310
    %v313 = vcvt.s32.f32 %v306
    %v314 = vmul.f32 %v313, %v311
    %v315 = vxor.u32 %v314, 2147483648
    %v316 = vsel %vm195, %v315, %v314
    %v317 = vsub.s32 4, %v293
    %v318 = vsel %vm195, %v317, %v293
    %v319 = vsel %vm194, %v33, %v316
    %v320 = vsel %vm194, 0, %v318
    %v321 = vmul.f32 %v319, %v319
    %v322 = vmul.f32 %v321, -0.001358992
    %v323 = vadd.f32 %v322, 0.041655596
    %v324 = vmul.f32 %v321, %v323
    %v325 = vadd.f32 %v324, -0.4999988
    %v326 = vmul.f32 %v321, %v325
    %v327 = vadd.f32 1.0, %v326
    %v328 = vmul.f32 %v319, %v319
    %v329 = vmul.f32 %v328, -0.00019511016
    %v330 = vadd.f32 %v329, 0.008332121
    %v331 = vmul.f32 %v328, %v330
    %v332 = vadd.f32 %v331, -0.16666654
    %v333 = vmul.f32 %v328, %v332
    %v334 = vadd.f32 %v333, 1.0
    %v335 = vmul.f32 %v334, %v319
    %vm336 = vweird.f32 %v33
    %v337 = vand.u32 %v320, 3
    %vm338 = vcmp.lt.s32.totalorder %v337, 2
    %vm339 = vcmp.eq.s32.totalorder %v337, 0
    %v340 = vxor.u32 %v335, 2147483648
    %v341 = vsel %vm339, %v327, %v340
    %vm342 = vcmp.eq.s32.totalorder %v337, 2
    %v343 = vxor.u32 %v327, 2147483648
    %v344 = vsel %vm342, %v343, %v335
    %v345 = vsel %vm338, %v341, %v344
    %v346 = vsel %vm336, nan, %v345
    %v347 = vsel %vm37, 1, 0
    %vm348 = vcmp.eq.s32.totalorder %v347, 1
    %v349 = vsel %vm348, %v192, %v346
    %vm350 = vcmask 261120
    %351 = vst.msk [vmem:[#allocation5] sm:$0xff] %vm350, %v349
    // Predicated region
    $region10: #{tpu_custom_call.1} parent=1 // pred_check
      _
    $region11: #{tpu_custom_call.1} parent=1 // pred_check_branch
      %353 = sbr.rel (0) target = $region13
    $region12: #{tpu_custom_call.1} parent=1 // pred_region
      %355 = vsyncadd [#allocation4], 0
      %s357 = sshll.u32 [#allocation5], 4
      %s358 = int_to_ptr.vmem [resolvable:$true] %s357
      %s359 = sshll.u32 %s1, 4
      %s360 = int_to_ptr.hbm [resolvable:$true] %s359
      %362 = dma.vmem_to_hbm [thread:$0]  %s358, 128, %s360, [#allocation4]
    $region13: #{tpu_custom_call.1} parent=1 // pred_fallthru
      _
    // Predicated region
    $region14: #{tpu_custom_call.1} parent=1 // pred_check
      _
    $region15: #{tpu_custom_call.1} parent=1 // pred_check_branch
      %364 = sbr.rel (0) target = $region17
    $region16: #{tpu_custom_call.1} parent=1 // pred_region
      %366 = dma.done [#allocation4], 128
    $region17: #{tpu_custom_call.1} parent=1 // pred_fallthru
      _
    %367 = vsyncpa [#allocation3], 1
    %368 = vsyncpa [#allocation4], 1

</llo_original>
